<compile_context>
chip_gen: v7x
topology: tpu7x:2x2x1
jax: 0.10.0
libtpu: 0.0.40
codegen_flags: <defaults>
</compile_context>

<pallas_src>
import functools

import jax
import jax.numpy as jnp
from jax.experimental import pallas as pl
from jax.experimental.pallas import tpu as pltpu

INPUT_DIM = 16
OUTPUT_DIM = 4
DEPTH = 3          # -> 1 input Linear + (DEPTH-1) hidden Linears + 1 output Linear
WIDTH = 32
LN_EPS = 1e-5

_LANE = 128
_SUBLANE = 8
OUT_SUB = 8        # w_out/b_out zero-padded to 8 sublanes for a clean MXU result tile

TILE_B_MAX = 4096  # default max batch rows per grid step (sweep 2048-8192)
MIN_TILES = 8      # aim for >= this many grid steps (>=2 keeps both v7x TCs busy)


def _round_up(x, m):
    return ((x + m - 1) // m) * m


def _choose_tile_b(batch, cap=TILE_B_MAX):
    """Pick a lane-aligned tile so there are >= MIN_TILES grid steps when possible."""
    if batch <= _LANE:
        return int(batch)                       # single tile; block dims == array dims
    cap = max(_LANE, (int(cap) // _LANE) * _LANE)
    want = _round_up(pl.cdiv(batch, MIN_TILES), _LANE)
    return int(min(cap, max(_LANE, want)))


def _vmem_limit_bytes(tile_b):
    """Real double-buffered working set (+~50% headroom), no artificial clamp."""
    item = 4  # f32
    tb = _round_up(tile_b, _LANE)
    # VMEM buffers pad to the native f32 (8, 128) tile.
    x_tile = tile_b * max(INPUT_DIM, _LANE) * item          # (tile_b, 16) -> 128 lanes
    out_tile = _round_up(OUTPUT_DIM, _SUBLANE) * tb * item  # (4, tile_b) -> 8 sublanes
    h_tile = WIDTH * tb * item                               # feature-major activations
    params_bytes = (WIDTH * max(INPUT_DIM, _LANE)                        # w_in
                    + (DEPTH - 1) * (WIDTH * max(WIDTH, _LANE)
                                     + 3 * WIDTH * _LANE)                # w_hid,b,gamma,beta
                    + OUT_SUB * max(WIDTH, _LANE) + OUT_SUB * _LANE      # w_out, b_out
                    ) * item
    raw = 2 * (x_tile + out_tile) + 2 * params_bytes + 8 * h_tile
    limit = int(raw * 1.5) + (8 << 20)   # headroom incl. Mosaic internal scratch
    return min(limit, 48 << 20)          # stay comfortably under v7x's 64 MiB VMEM


def _layernorm_fm(h, gamma, beta):
    # torch.nn.LayerNorm over the feature axis (axis 0 in feature-major layout),
    # biased variance, eps=1e-5.  Variance via E[x^2] - mean^2: two independent
    # sublane reductions (shorter dependent XLU/VALU chain).
    mean = jnp.mean(h, axis=0, keepdims=True)          # (1, tile_b)
    mean_sq = jnp.mean(h * h, axis=0, keepdims=True)   # (1, tile_b)
    var = mean_sq - mean * mean
    inv = jax.lax.rsqrt(var + LN_EPS)
    return (h - mean) * inv * gamma + beta


def mlp_kernel(x_ref, w_in_ref, b_in_ref,
               w_hid_ref, b_hid_ref, gamma_ref, beta_ref,
               w_out_ref, b_out_ref, out_ref):
    # ---- input Linear (feature-major result) + ReLU ----
    # h[f, b] = sum_d W_in[f, d] * x[b, d]  == W_in @ x^T, expressed as an
    # A @ B^T dot_general so x stays in its natural (batch, feature) layout.
    h = jax.lax.dot_general(
        w_in_ref[...], x_ref[...],
        dimension_numbers=(((1,), (1,)), ((), ())),
        preferred_element_type=jnp.float32)                       # (WIDTH, tile_b)
    h = jnp.maximum(h + b_in_ref[...], 0.0)

    # ---- hidden blocks: Linear -> LayerNorm -> ReLU -> Dropout(identity) ----
    for layer in range(DEPTH - 1):                                # small & static: unrolls
        h = jnp.dot(w_hid_ref[layer], h,
                    preferred_element_type=jnp.float32) + b_hid_ref[layer]
        h = _layernorm_fm(h, gamma_ref[layer], beta_ref[layer])
        h = jnp.maximum(h, 0.0)
        # TODO(synk): Dropout(p=0.1) is identity in eval mode; training-mode
        # dropout would use pltpu.prng_seed + pltpu.prng_random_bits here.

    # ---- output Linear (w_out zero-padded to 8 sublanes; store the 4 real rows,
    #      lane-dense along the batch axis) ----
    res = jnp.dot(w_out_ref[...], h,
                  preferred_element_type=jnp.float32) + b_out_ref[...]   # (8, tile_b)
    out_ref[...] = res[:OUTPUT_DIM, :].astype(out_ref.dtype)


@functools.partial(jax.jit, static_argnames=("tile_b_cap", "feature_major_output"))
def mlp_forward(x, params, *, tile_b_cap=TILE_B_MAX, feature_major_output=False):
    batch = x.shape[0]
    tile_b = _choose_tile_b(batch, tile_b_cap)
    n_tiles = pl.cdiv(batch, tile_b)   # last tile may be ragged; Pallas clamps it

    # Tiny one-time pad of the output projection to a full 8-sublane MXU tile.
    w_out_p = jnp.pad(params["w_out"], ((0, OUT_SUB - OUTPUT_DIM), (0, 0)))
    b_out_p = jnp.pad(params["b_out"], ((0, OUT_SUB - OUTPUT_DIM), (0, 0)))

    # Parameter BlockSpecs are constant in the grid index -> VMEM-resident.
    resident2 = lambda i: (0, 0)
    resident3 = lambda i: (0, 0, 0)

    out_fm = pl.pallas_call(
        mlp_kernel,
        out_shape=jax.ShapeDtypeStruct((OUTPUT_DIM, batch), jnp.float32),
        grid=(n_tiles,),
        in_specs=[
            pl.BlockSpec((tile_b, INPUT_DIM), lambda i: (i, 0)),      # x (batch-major)
            pl.BlockSpec((WIDTH, INPUT_DIM), resident2),              # w_in   (out, in)
            pl.BlockSpec((WIDTH, 1), resident2),                      # b_in
            pl.BlockSpec((DEPTH - 1, WIDTH, WIDTH), resident3),       # w_hid  (out, in)
            pl.BlockSpec((DEPTH - 1, WIDTH, 1), resident3),           # b_hid
            pl.BlockSpec((DEPTH - 1, WIDTH, 1), resident3),           # gamma
            pl.BlockSpec((DEPTH - 1, WIDTH, 1), resident3),           # beta
            pl.BlockSpec((OUT_SUB, WIDTH), resident2),                # w_out (padded rows)
            pl.BlockSpec((OUT_SUB, 1), resident2),                    # b_out (padded rows)
        ],
        out_specs=pl.BlockSpec((OUTPUT_DIM, tile_b), lambda i: (0, i)),
        compiler_params=pltpu.CompilerParams(
            dimension_semantics=("parallel",),
            vmem_limit_bytes=_vmem_limit_bytes(tile_b),
        ),
    )(x,
      params["w_in"], params["b_in"],
      params["w_hid"], params["b_hid"],
      params["gamma"], params["beta"],
      w_out_p, b_out_p)

    if feature_major_output:
        return out_fm            # (OUTPUT_DIM, batch): the kernel's lane-dense layout
    # Tiny (16 B/row) transpose to match the PyTorch (batch, OUTPUT_DIM) interface.
    return out_fm.T


def init_params(key):
    """Weights stored (out_features, in_features) -- torch.nn.Linear orientation."""
    ks = jax.random.split(key, 6)
    s_in = 1.0 / jnp.sqrt(INPUT_DIM)
    s_w = 1.0 / jnp.sqrt(WIDTH)
    return {
        "w_in": jax.random.uniform(ks[0], (WIDTH, INPUT_DIM), jnp.float32, -s_in, s_in),
        "b_in": jax.random.uniform(ks[1], (WIDTH, 1), jnp.float32, -s_in, s_in),
        "w_hid": jax.random.uniform(ks[2], (DEPTH - 1, WIDTH, WIDTH), jnp.float32,
                                    -s_w, s_w),
        "b_hid": jax.random.uniform(ks[3], (DEPTH - 1, WIDTH, 1), jnp.float32,
                                    -s_w, s_w),
        "gamma": jnp.ones((DEPTH - 1, WIDTH, 1), jnp.float32),
        "beta": jnp.zeros((DEPTH - 1, WIDTH, 1), jnp.float32),
        "w_out": jax.random.uniform(ks[4], (OUTPUT_DIM, WIDTH), jnp.float32, -s_w, s_w),
        "b_out": jax.random.uniform(ks[5], (OUTPUT_DIM, 1), jnp.float32, -s_w, s_w),
    }


def mlp_reference(x, params):
    """Pure-JAX reference of the same eval-mode forward pass (PyTorch semantics)."""
    h = x @ params["w_in"].T + params["b_in"][:, 0]
    h = jnp.maximum(h, 0.0)
    for layer in range(DEPTH - 1):
        h = h @ params["w_hid"][layer].T + params["b_hid"][layer, :, 0]
        mean = jnp.mean(h, axis=-1, keepdims=True)
        var = jnp.mean((h - mean) ** 2, axis=-1, keepdims=True)
        h = ((h - mean) * jax.lax.rsqrt(var + LN_EPS)
             * params["gamma"][layer, :, 0] + params["beta"][layer, :, 0])
        h = jnp.maximum(h, 0.0)
    return h @ params["w_out"].T + params["b_out"][:, 0]


if __name__ == "__main__":
    key = jax.random.PRNGKey(0)
    pkey, xkey = jax.random.split(key)
    params = init_params(pkey)

    # Non-multiple of the tile size to exercise the ragged-last-tile path, and
    # enough rows that the auto-chosen tile gives several pipelined grid steps.
    batch = 1000
    x = jax.random.normal(xkey, (batch, INPUT_DIM), jnp.float32)

    out = mlp_forward(x, params)
    out = jax.block_until_ready(out)

    ref = mlp_reference(x, params)
    assert out.shape == (batch, OUTPUT_DIM)
    err = float(jnp.max(jnp.abs(out - ref)))
    assert err < 1e-4, f"max abs error {err}"

    print("KERNEL_OK")
</pallas_src>

<mosaic_0001>
module attributes {stable_mosaic.version = 11 : i64} {
  func.func @mlp_kernel(%arg0: i32, %arg1: memref<128x16xf32, #tpu.memory_space<vmem>>, %arg2: memref<32x16xf32, #tpu.memory_space<vmem>>, %arg3: memref<32x1xf32, #tpu.memory_space<vmem>>, %arg4: memref<2x32x32xf32, #tpu.memory_space<vmem>>, %arg5: memref<2x32x1xf32, #tpu.memory_space<vmem>>, %arg6: memref<2x32x1xf32, #tpu.memory_space<vmem>>, %arg7: memref<2x32x1xf32, #tpu.memory_space<vmem>>, %arg8: memref<8x32xf32, #tpu.memory_space<vmem>>, %arg9: memref<8x1xf32, #tpu.memory_space<vmem>>, %arg10: memref<4x128xf32, #tpu.memory_space<vmem>>) attributes {dimension_semantics = [#tpu.dimension_semantics<parallel>], iteration_bounds = array<i64: 8>, scalar_prefetch = 0 : i64, scratch_operands = 0 : i64, tpu.core_type = #tpu.core_type<tc>, window_params = [{transform_indices = @transform_0, window_bounds = array<i64: 128, 16>}, {pipeline_mode = #tpu.pipeline_mode<synchronous>, transform_indices = @transform_1, window_bounds = array<i64: 32, 16>}, {pipeline_mode = #tpu.pipeline_mode<synchronous>, transform_indices = @transform_2, window_bounds = array<i64: 32, 1>}, {pipeline_mode = #tpu.pipeline_mode<synchronous>, transform_indices = @transform_3, window_bounds = array<i64: 2, 32, 32>}, {pipeline_mode = #tpu.pipeline_mode<synchronous>, transform_indices = @transform_4, window_bounds = array<i64: 2, 32, 1>}, {pipeline_mode = #tpu.pipeline_mode<synchronous>, transform_indices = @transform_5, window_bounds = array<i64: 2, 32, 1>}, {pipeline_mode = #tpu.pipeline_mode<synchronous>, transform_indices = @transform_6, window_bounds = array<i64: 2, 32, 1>}, {pipeline_mode = #tpu.pipeline_mode<synchronous>, transform_indices = @transform_7, window_bounds = array<i64: 8, 32>}, {pipeline_mode = #tpu.pipeline_mode<synchronous>, transform_indices = @transform_8, window_bounds = array<i64: 8, 1>}, {transform_indices = @transform_9, window_bounds = array<i64: 4, 128>}]} {
    %c0 = arith.constant 0 : index
    %c0_0 = arith.constant 0 : index
    %0 = vector.load %arg2[%c0, %c0_0] : memref<32x16xf32, #tpu.memory_space<vmem>>, vector<32x16xf32>
    %c0_1 = arith.constant 0 : index
    %c0_2 = arith.constant 0 : index
    %1 = vector.load %arg1[%c0_1, %c0_2] : memref<128x16xf32, #tpu.memory_space<vmem>>, vector<128x16xf32>
    %cst = arith.constant dense<0.000000e+00> : vector<32x128xf32>
    %2 = tpu.matmul %0, %1, %cst {dimension_numbers = #tpu.dot_dimension_numbers<[1], [1], [0], [0], [0, 0, 1, 0], [], []>} : vector<32x16xf32>, vector<128x16xf32>, vector<32x128xf32> -> vector<32x128xf32>
    %c0_3 = arith.constant 0 : index
    %c0_4 = arith.constant 0 : index
    %3 = vector.load %arg3[%c0_3, %c0_4] : memref<32x1xf32, #tpu.memory_space<vmem>>, vector<32x1xf32>
    %4 = vector.broadcast %3 : vector<32x1xf32> to vector<32x128xf32>
    %5 = arith.addf %2, %4 : vector<32x128xf32>
    %cst_5 = arith.constant 0.000000e+00 : f32
    %6 = vector.broadcast %cst_5 : f32 to vector<32x128xf32>
    %7 = arith.maximumf %5, %6 : vector<32x128xf32>
    %c0_6 = arith.constant 0 : index
    %c0_7 = arith.constant 0 : index
    %c0_8 = arith.constant 0 : index
    %8 = vector.load %arg4[%c0_6, %c0_7, %c0_8] : memref<2x32x32xf32, #tpu.memory_space<vmem>>, vector<1x32x32xf32>
    %9 = vector.shape_cast %8 : vector<1x32x32xf32> to vector<32x32xf32>
    %cst_9 = arith.constant dense<0.000000e+00> : vector<32x128xf32>
    %10 = tpu.matmul %9, %7, %cst_9 {dimension_numbers = #tpu.dot_dimension_numbers<[1], [0], [0], [1], [0, 0, 1, 1], [], []>} : vector<32x32xf32>, vector<32x128xf32>, vector<32x128xf32> -> vector<32x128xf32>
    %c0_10 = arith.constant 0 : index
    %c0_11 = arith.constant 0 : index
    %c0_12 = arith.constant 0 : index
    %11 = vector.load %arg5[%c0_10, %c0_11, %c0_12] : memref<2x32x1xf32, #tpu.memory_space<vmem>>, vector<1x32x1xf32>
    %12 = vector.shape_cast %11 : vector<1x32x1xf32> to vector<32x1xf32>
    %13 = vector.broadcast %12 : vector<32x1xf32> to vector<32x128xf32>
    %14 = arith.addf %10, %13 : vector<32x128xf32>
    %c0_13 = arith.constant 0 : index
    %c0_14 = arith.constant 0 : index
    %c0_15 = arith.constant 0 : index
    %15 = vector.load %arg6[%c0_13, %c0_14, %c0_15] : memref<2x32x1xf32, #tpu.memory_space<vmem>>, vector<1x32x1xf32>
    %16 = vector.shape_cast %15 : vector<1x32x1xf32> to vector<32x1xf32>
    %c0_16 = arith.constant 0 : index
    %c0_17 = arith.constant 0 : index
    %c0_18 = arith.constant 0 : index
    %17 = vector.load %arg7[%c0_16, %c0_17, %c0_18] : memref<2x32x1xf32, #tpu.memory_space<vmem>>, vector<1x32x1xf32>
    %18 = vector.shape_cast %17 : vector<1x32x1xf32> to vector<32x1xf32>
    %cst_19 = arith.constant dense<0.000000e+00> : vector<128xf32>
    %19 = vector.multi_reduction <add>, %14, %cst_19 [0] : vector<32x128xf32> to vector<128xf32>
    %20 = vector.shape_cast %19 : vector<128xf32> to vector<1x128xf32>
    %cst_20 = arith.constant 3.200000e+01 : f32
    %21 = vector.broadcast %cst_20 : f32 to vector<1x128xf32>
    %22 = arith.divf %20, %21 : vector<1x128xf32>
    %23 = arith.mulf %14, %14 : vector<32x128xf32>
    %cst_21 = arith.constant dense<0.000000e+00> : vector<128xf32>
    %24 = vector.multi_reduction <add>, %23, %cst_21 [0] : vector<32x128xf32> to vector<128xf32>
    %25 = vector.shape_cast %24 : vector<128xf32> to vector<1x128xf32>
    %cst_22 = arith.constant 3.200000e+01 : f32
    %26 = vector.broadcast %cst_22 : f32 to vector<1x128xf32>
    %27 = arith.divf %25, %26 : vector<1x128xf32>
    %28 = arith.mulf %22, %22 : vector<1x128xf32>
    %29 = arith.subf %27, %28 : vector<1x128xf32>
    %cst_23 = arith.constant 9.99999974E-6 : f32
    %30 = vector.broadcast %cst_23 : f32 to vector<1x128xf32>
    %31 = arith.addf %29, %30 : vector<1x128xf32>
    %32 = math.rsqrt %31 : vector<1x128xf32>
    %33 = vector.broadcast %22 : vector<1x128xf32> to vector<32x128xf32>
    %34 = arith.subf %14, %33 : vector<32x128xf32>
    %35 = vector.broadcast %32 : vector<1x128xf32> to vector<32x128xf32>
    %36 = arith.mulf %34, %35 : vector<32x128xf32>
    %37 = vector.broadcast %16 : vector<32x1xf32> to vector<32x128xf32>
    %38 = arith.mulf %36, %37 : vector<32x128xf32>
    %39 = vector.broadcast %18 : vector<32x1xf32> to vector<32x128xf32>
    %40 = arith.addf %38, %39 : vector<32x128xf32>
    %cst_24 = arith.constant 0.000000e+00 : f32
    %41 = vector.broadcast %cst_24 : f32 to vector<32x128xf32>
    %42 = arith.maximumf %40, %41 : vector<32x128xf32>
    %c1 = arith.constant 1 : index
    %c0_25 = arith.constant 0 : index
    %c0_26 = arith.constant 0 : index
    %43 = vector.load %arg4[%c1, %c0_25, %c0_26] : memref<2x32x32xf32, #tpu.memory_space<vmem>>, vector<1x32x32xf32>
    %44 = vector.shape_cast %43 : vector<1x32x32xf32> to vector<32x32xf32>
    %cst_27 = arith.constant dense<0.000000e+00> : vector<32x128xf32>
    %45 = tpu.matmul %44, %42, %cst_27 {dimension_numbers = #tpu.dot_dimension_numbers<[1], [0], [0], [1], [0, 0, 1, 1], [], []>} : vector<32x32xf32>, vector<32x128xf32>, vector<32x128xf32> -> vector<32x128xf32>
    %c1_28 = arith.constant 1 : index
    %c0_29 = arith.constant 0 : index
    %c0_30 = arith.constant 0 : index
    %46 = vector.load %arg5[%c1_28, %c0_29, %c0_30] : memref<2x32x1xf32, #tpu.memory_space<vmem>>, vector<1x32x1xf32>
    %47 = vector.shape_cast %46 : vector<1x32x1xf32> to vector<32x1xf32>
    %48 = vector.broadcast %47 : vector<32x1xf32> to vector<32x128xf32>
    %49 = arith.addf %45, %48 : vector<32x128xf32>
    %c1_31 = arith.constant 1 : index
    %c0_32 = arith.constant 0 : index
    %c0_33 = arith.constant 0 : index
    %50 = vector.load %arg6[%c1_31, %c0_32, %c0_33] : memref<2x32x1xf32, #tpu.memory_space<vmem>>, vector<1x32x1xf32>
    %51 = vector.shape_cast %50 : vector<1x32x1xf32> to vector<32x1xf32>
    %c1_34 = arith.constant 1 : index
    %c0_35 = arith.constant 0 : index
    %c0_36 = arith.constant 0 : index
    %52 = vector.load %arg7[%c1_34, %c0_35, %c0_36] : memref<2x32x1xf32, #tpu.memory_space<vmem>>, vector<1x32x1xf32>
    %53 = vector.shape_cast %52 : vector<1x32x1xf32> to vector<32x1xf32>
    %cst_37 = arith.constant dense<0.000000e+00> : vector<128xf32>
    %54 = vector.multi_reduction <add>, %49, %cst_37 [0] : vector<32x128xf32> to vector<128xf32>
    %55 = vector.shape_cast %54 : vector<128xf32> to vector<1x128xf32>
    %cst_38 = arith.constant 3.200000e+01 : f32
    %56 = vector.broadcast %cst_38 : f32 to vector<1x128xf32>
    %57 = arith.divf %55, %56 : vector<1x128xf32>
    %58 = arith.mulf %49, %49 : vector<32x128xf32>
    %cst_39 = arith.constant dense<0.000000e+00> : vector<128xf32>
    %59 = vector.multi_reduction <add>, %58, %cst_39 [0] : vector<32x128xf32> to vector<128xf32>
    %60 = vector.shape_cast %59 : vector<128xf32> to vector<1x128xf32>
    %cst_40 = arith.constant 3.200000e+01 : f32
    %61 = vector.broadcast %cst_40 : f32 to vector<1x128xf32>
    %62 = arith.divf %60, %61 : vector<1x128xf32>
    %63 = arith.mulf %57, %57 : vector<1x128xf32>
    %64 = arith.subf %62, %63 : vector<1x128xf32>
    %cst_41 = arith.constant 9.99999974E-6 : f32
    %65 = vector.broadcast %cst_41 : f32 to vector<1x128xf32>
    %66 = arith.addf %64, %65 : vector<1x128xf32>
    %67 = math.rsqrt %66 : vector<1x128xf32>
    %68 = vector.broadcast %57 : vector<1x128xf32> to vector<32x128xf32>
    %69 = arith.subf %49, %68 : vector<32x128xf32>
    %70 = vector.broadcast %67 : vector<1x128xf32> to vector<32x128xf32>
    %71 = arith.mulf %69, %70 : vector<32x128xf32>
    %72 = vector.broadcast %51 : vector<32x1xf32> to vector<32x128xf32>
    %73 = arith.mulf %71, %72 : vector<32x128xf32>
    %74 = vector.broadcast %53 : vector<32x1xf32> to vector<32x128xf32>
    %75 = arith.addf %73, %74 : vector<32x128xf32>
    %cst_42 = arith.constant 0.000000e+00 : f32
    %76 = vector.broadcast %cst_42 : f32 to vector<32x128xf32>
    %77 = arith.maximumf %75, %76 : vector<32x128xf32>
    %c0_43 = arith.constant 0 : index
    %c0_44 = arith.constant 0 : index
    %78 = vector.load %arg8[%c0_43, %c0_44] : memref<8x32xf32, #tpu.memory_space<vmem>>, vector<8x32xf32>
    %cst_45 = arith.constant dense<0.000000e+00> : vector<8x128xf32>
    %79 = tpu.matmul %78, %77, %cst_45 {dimension_numbers = #tpu.dot_dimension_numbers<[1], [0], [0], [1], [0, 0, 1, 1], [], []>} : vector<8x32xf32>, vector<32x128xf32>, vector<8x128xf32> -> vector<8x128xf32>
    %c0_46 = arith.constant 0 : index
    %c0_47 = arith.constant 0 : index
    %80 = vector.load %arg9[%c0_46, %c0_47] : memref<8x1xf32, #tpu.memory_space<vmem>>, vector<8x1xf32>
    %81 = vector.broadcast %80 : vector<8x1xf32> to vector<8x128xf32>
    %82 = arith.addf %79, %81 : vector<8x128xf32>
    %83 = vector.extract_strided_slice %82 {offsets = [0, 0], sizes = [4, 128], strides = [1, 1]} : vector<8x128xf32> to vector<4x128xf32>
    %c0_48 = arith.constant 0 : index
    %c0_49 = arith.constant 0 : index
    %84 = vector.load %arg10[%c0_48, %c0_49] : memref<4x128xf32, #tpu.memory_space<vmem>>, vector<4x128xf32>
    tpu.vector_store %arg10[%c0_48, %c0_49], %83 {strides = array<i32>} : memref<4x128xf32, #tpu.memory_space<vmem>>, vector<4x128xf32>,
    return
  }
  func.func @transform_0(%arg0: i32) -> (i32, i32) {
    %c0_i32 = arith.constant 0 : i32
    %c0_i32_0 = arith.constant 0 : i32
    return %arg0, %c0_i32 : i32, i32
  }
  func.func @transform_1(%arg0: i32) -> (i32, i32) {
    %c0_i32 = arith.constant 0 : i32
    %c0_i32_0 = arith.constant 0 : i32
    %c0_i32_1 = arith.constant 0 : i32
    return %c0_i32, %c0_i32_0 : i32, i32
  }
  func.func @transform_2(%arg0: i32) -> (i32, i32) {
    %c0_i32 = arith.constant 0 : i32
    %c0_i32_0 = arith.constant 0 : i32
    %c0_i32_1 = arith.constant 0 : i32
    return %c0_i32, %c0_i32_0 : i32, i32
  }
  func.func @transform_3(%arg0: i32) -> (i32, i32, i32) {
    %c0_i32 = arith.constant 0 : i32
    %c0_i32_0 = arith.constant 0 : i32
    %c0_i32_1 = arith.constant 0 : i32
    %c0_i32_2 = arith.constant 0 : i32
    return %c0_i32, %c0_i32_0, %c0_i32_1 : i32, i32, i32
  }
  func.func @transform_4(%arg0: i32) -> (i32, i32, i32) {
    %c0_i32 = arith.constant 0 : i32
    %c0_i32_0 = arith.constant 0 : i32
    %c0_i32_1 = arith.constant 0 : i32
    %c0_i32_2 = arith.constant 0 : i32
    return %c0_i32, %c0_i32_0, %c0_i32_1 : i32, i32, i32
  }
  func.func @transform_5(%arg0: i32) -> (i32, i32, i32) {
    %c0_i32 = arith.constant 0 : i32
    %c0_i32_0 = arith.constant 0 : i32
    %c0_i32_1 = arith.constant 0 : i32
    %c0_i32_2 = arith.constant 0 : i32
    return %c0_i32, %c0_i32_0, %c0_i32_1 : i32, i32, i32
  }
  func.func @transform_6(%arg0: i32) -> (i32, i32, i32) {
    %c0_i32 = arith.constant 0 : i32
    %c0_i32_0 = arith.constant 0 : i32
    %c0_i32_1 = arith.constant 0 : i32
    %c0_i32_2 = arith.constant 0 : i32
    return %c0_i32, %c0_i32_0, %c0_i32_1 : i32, i32, i32
  }
  func.func @transform_7(%arg0: i32) -> (i32, i32) {
    %c0_i32 = arith.constant 0 : i32
    %c0_i32_0 = arith.constant 0 : i32
    %c0_i32_1 = arith.constant 0 : i32
    return %c0_i32, %c0_i32_0 : i32, i32
  }
  func.func @transform_8(%arg0: i32) -> (i32, i32) {
    %c0_i32 = arith.constant 0 : i32
    %c0_i32_0 = arith.constant 0 : i32
    %c0_i32_1 = arith.constant 0 : i32
    return %c0_i32, %c0_i32_0 : i32, i32
  }
  func.func @transform_9(%arg0: i32) -> (i32, i32) {
    %c0_i32 = arith.constant 0 : i32
    %c0_i32_0 = arith.constant 0 : i32
    return %c0_i32, %arg0 : i32, i32
  }
}

</mosaic_0001>

<llo_original>
// kernel: mlp_forward.1
$region0: #{mlp_forward.1}
  #allocation0 [shape = 'u32[]', space=smem, size = 0x4, offset = 0x4, fixed_abs, tag = 'smem constant byte address 0x4 - core index']
  #allocation1 [shape = 'u32[144,128]{1,0:T(1,128)}', space=vmem, size = 0x12000, scoped, tag = 'internal scratch']
  %s0 = inlined_call_operand.vmem [shape: f32[1000,16], index: 0, kind: input, shape index: {}]
  %s1 = inlined_call_operand.vmem [shape: f32[32,16], index: 1, kind: input, shape index: {}]
  %s2 = inlined_call_operand.vmem [shape: f32[32,1], index: 2, kind: input, shape index: {}]
  %s3 = inlined_call_operand.vmem [shape: f32[2,32,32], index: 3, kind: input, shape index: {}]
  %s4 = inlined_call_operand.vmem [shape: f32[2,32,1], index: 4, kind: input, shape index: {}]
  %s5 = inlined_call_operand.vmem [shape: f32[2,32,1], index: 5, kind: input, shape index: {}]
  %s6 = inlined_call_operand.vmem [shape: f32[2,32,1], index: 6, kind: input, shape index: {}]
  %s7 = inlined_call_operand.vmem [shape: f32[8,32], index: 7, kind: input, shape index: {}]
  %s8 = inlined_call_operand.vmem [shape: f32[8,1], index: 8, kind: input, shape index: {}]
  %s9 = inlined_call_operand.hbm [shape: f32[4,1000], index: 9, kind: output, shape index: {}]
  %s10 = sld [smem:[#allocation0]]
  $region69: #{mlp_forward.1} parent=0
    _
  %s12 = ssub.s32 1, %s10
  %s13 = scalar_select 0, %s12, %s10
  $region1: #{mlp_forward.1} parent=0
    #allocation2 [shape = 'u8[4096]{0}', space=vmem, size = 0x1000, scoped, tag = 'output window, operand 0']
    #allocation3 [shape = 's32[2]{0}', space=sflag, size = 0x8, scoped, tag = 'scoped memory for mlp_forward.1']
    %14 = vsyncpa [#allocation3], 0
    %s15 = scalar_lea.sflag [#allocation3], 1
    %16 = vsyncpa %s15, 0
    loop: start=0, step=1, limit=10
    $region2: #{mlp_forward.1} parent=1 // loop_pre_header
      _
    $region3: #{mlp_forward.1} parent=1 // loop_header
      %s18 = sphi 0, %s22
      %p19 = scmp.ge.s32.totalorder %s18, 10
      %s28 = sphi 0, %s30
      %s31 = sphi 0, %s28
      %s32 = sphi 0, %s31
      %s48 = sphi 0, %s32
      %s52 = sphi 0, %s52
      %s54 = sphi 0, %s52
      %s55 = sphi 0, %s54
      %s69 = sphi 0, %s55
      %s73 = sphi 0, %s73
      %s75 = sphi 0, %s73
      %s76 = sphi 0, %s75
      %s90 = sphi 0, %s76
      %s94 = sphi 0, %s94
      %s96 = sphi 0, %s94
      %s97 = sphi 0, %s96
      %s111 = sphi 0, %s97
      %s115 = sphi 0, %s115
      %s117 = sphi 0, %s115
      %s118 = sphi 0, %s117
      %s132 = sphi 0, %s118
      %s136 = sphi 0, %s136
      %s138 = sphi 0, %s136
      %s139 = sphi 0, %s138
      %s153 = sphi 0, %s139
      %s157 = sphi 0, %s157
      %s159 = sphi 0, %s157
      %s160 = sphi 0, %s159
      %s174 = sphi 0, %s160
      %s178 = sphi 0, %s178
      %s180 = sphi 0, %s178
      %s181 = sphi 0, %s180
      %s195 = sphi 0, %s181
      %s199 = sphi 0, %s199
      %s201 = sphi 0, %s199
      %s202 = sphi 0, %s201
      %s216 = sphi 0, %s202
      %s222 = sphi 0, %s224
      %s225 = sphi 0, %s222
      %s226 = sphi 0, %s225
      %s242 = sphi 0, %s226
    $region4: #{mlp_forward.1} parent=1 // loop_header_branch
      %21 = sbr.rel (%p19) target = $region8
    $region5: #{mlp_forward.1} parent=1 // loop_body
      %s23 = ssub.s32 %s18, 1
      %s24 = ssub.s32 %s18, 2
      %s25 = sadd.s32 %s18, 1
      %s26 = ssub.s32 %s18, %s25
      %p27 = scmp.eq.s32.totalorder %s26, 0
      %s29 = sadd.s32 %s28, 1
      %s30 = scalar_select %p27, %s28, %s29
      %p33 = pneg %p27
      %p34 = scmp.eq.s32.totalorder %s18, 7
      %p35 = por %p33, %p34
      %p36 = scmp.ne.s32.totalorder %s28, %s31
      %p37 = scmp.eq.s32.totalorder %s18, 0
      %p38 = por %p36, %p37
      %p39 = scmp.ne.s32.totalorder %s28, %s31
      %p40 = scmp.eq.s32.totalorder %s23, 7
      %p41 = por %p39, %p40
      %p42 = scmp.ne.s32.totalorder %s31, %s32
      %p43 = scmp.eq.s32.totalorder %s23, 0
      %p44 = por %p42, %p43
      %p45 = scmp.ne.s32.totalorder %s31, %s32
      %p46 = scmp.eq.s32.totalorder %s24, 7
      %p47 = por %p45, %p46
      %p49 = scmp.ne.s32.totalorder %s32, %s48
      %p50 = scmp.eq.s32.totalorder %s24, 0
      %p51 = por %p49, %p50
      %s53 = sadd.s32 %s52, 1
      %p56 = scmp.eq.s32.totalorder %s18, 7
      %p57 = scmp.ne.s32.totalorder %s52, %s54
      %p58 = scmp.eq.s32.totalorder %s18, 0
      %p59 = por %p57, %p58
      %p60 = scmp.ne.s32.totalorder %s52, %s54
      %p61 = scmp.eq.s32.totalorder %s23, 7
      %p62 = por %p60, %p61
      %p63 = scmp.ne.s32.totalorder %s54, %s55
      %p64 = scmp.eq.s32.totalorder %s23, 0
      %p65 = por %p63, %p64
      %p66 = scmp.ne.s32.totalorder %s54, %s55
      %p67 = scmp.eq.s32.totalorder %s24, 7
      %p68 = por %p66, %p67
      %p70 = scmp.ne.s32.totalorder %s55, %s69
      %p71 = scmp.eq.s32.totalorder %s24, 0
      %p72 = por %p70, %p71
      %s74 = sadd.s32 %s73, 1
      %p77 = scmp.eq.s32.totalorder %s18, 7
      %p78 = scmp.ne.s32.totalorder %s73, %s75
      %p79 = scmp.eq.s32.totalorder %s18, 0
      %p80 = por %p78, %p79
      %p81 = scmp.ne.s32.totalorder %s73, %s75
      %p82 = scmp.eq.s32.totalorder %s23, 7
      %p83 = por %p81, %p82
      %p84 = scmp.ne.s32.totalorder %s75, %s76
      %p85 = scmp.eq.s32.totalorder %s23, 0
      %p86 = por %p84, %p85
      %p87 = scmp.ne.s32.totalorder %s75, %s76
      %p88 = scmp.eq.s32.totalorder %s24, 7
      %p89 = por %p87, %p88
      %p91 = scmp.ne.s32.totalorder %s76, %s90
      %p92 = scmp.eq.s32.totalorder %s24, 0
      %p93 = por %p91, %p92
      %s95 = sadd.s32 %s94, 1
      %p98 = scmp.eq.s32.totalorder %s18, 7
      %p99 = scmp.ne.s32.totalorder %s94, %s96
      %p100 = scmp.eq.s32.totalorder %s18, 0
      %p101 = por %p99, %p100
      %p102 = scmp.ne.s32.totalorder %s94, %s96
      %p103 = scmp.eq.s32.totalorder %s23, 7
      %p104 = por %p102, %p103
      %p105 = scmp.ne.s32.totalorder %s96, %s97
      %p106 = scmp.eq.s32.totalorder %s23, 0
      %p107 = por %p105, %p106
      %p108 = scmp.ne.s32.totalorder %s96, %s97
      %p109 = scmp.eq.s32.totalorder %s24, 7
      %p110 = por %p108, %p109
      %p112 = scmp.ne.s32.totalorder %s97, %s111
      %p113 = scmp.eq.s32.totalorder %s24, 0
      %p114 = por %p112, %p113
      %s116 = sadd.s32 %s115, 1
      %p119 = scmp.eq.s32.totalorder %s18, 7
      %p120 = scmp.ne.s32.totalorder %s115, %s117
      %p121 = scmp.eq.s32.totalorder %s18, 0
      %p122 = por %p120, %p121
      %p123 = scmp.ne.s32.totalorder %s115, %s117
      %p124 = scmp.eq.s32.totalorder %s23, 7
      %p125 = por %p123, %p124
      %p126 = scmp.ne.s32.totalorder %s117, %s118
      %p127 = scmp.eq.s32.totalorder %s23, 0
      %p128 = por %p126, %p127
      %p129 = scmp.ne.s32.totalorder %s117, %s118
      %p130 = scmp.eq.s32.totalorder %s24, 7
      %p131 = por %p129, %p130
      %p133 = scmp.ne.s32.totalorder %s118, %s132
      %p134 = scmp.eq.s32.totalorder %s24, 0
      %p135 = por %p133, %p134
      %s137 = sadd.s32 %s136, 1
      %p140 = scmp.eq.s32.totalorder %s18, 7
      %p141 = scmp.ne.s32.totalorder %s136, %s138
      %p142 = scmp.eq.s32.totalorder %s18, 0
      %p143 = por %p141, %p142
      %p144 = scmp.ne.s32.totalorder %s136, %s138
      %p145 = scmp.eq.s32.totalorder %s23, 7
      %p146 = por %p144, %p145
      %p147 = scmp.ne.s32.totalorder %s138, %s139
      %p148 = scmp.eq.s32.totalorder %s23, 0
      %p149 = por %p147, %p148
      %p150 = scmp.ne.s32.totalorder %s138, %s139
      %p151 = scmp.eq.s32.totalorder %s24, 7
      %p152 = por %p150, %p151
      %p154 = scmp.ne.s32.totalorder %s139, %s153
      %p155 = scmp.eq.s32.totalorder %s24, 0
      %p156 = por %p154, %p155
      %s158 = sadd.s32 %s157, 1
      %p161 = scmp.eq.s32.totalorder %s18, 7
      %p162 = scmp.ne.s32.totalorder %s157, %s159
      %p163 = scmp.eq.s32.totalorder %s18, 0
      %p164 = por %p162, %p163
      %p165 = scmp.ne.s32.totalorder %s157, %s159
      %p166 = scmp.eq.s32.totalorder %s23, 7
      %p167 = por %p165, %p166
      %p168 = scmp.ne.s32.totalorder %s159, %s160
      %p169 = scmp.eq.s32.totalorder %s23, 0
      %p170 = por %p168, %p169
      %p171 = scmp.ne.s32.totalorder %s159, %s160
      %p172 = scmp.eq.s32.totalorder %s24, 7
      %p173 = por %p171, %p172
      %p175 = scmp.ne.s32.totalorder %s160, %s174
      %p176 = scmp.eq.s32.totalorder %s24, 0
      %p177 = por %p175, %p176
      %s179 = sadd.s32 %s178, 1
      %p182 = scmp.eq.s32.totalorder %s18, 7
      %p183 = scmp.ne.s32.totalorder %s178, %s180
      %p184 = scmp.eq.s32.totalorder %s18, 0
      %p185 = por %p183, %p184
      %p186 = scmp.ne.s32.totalorder %s178, %s180
      %p187 = scmp.eq.s32.totalorder %s23, 7
      %p188 = por %p186, %p187
      %p189 = scmp.ne.s32.totalorder %s180, %s181
      %p190 = scmp.eq.s32.totalorder %s23, 0
      %p191 = por %p189, %p190
      %p192 = scmp.ne.s32.totalorder %s180, %s181
      %p193 = scmp.eq.s32.totalorder %s24, 7
      %p194 = por %p192, %p193
      %p196 = scmp.ne.s32.totalorder %s181, %s195
      %p197 = scmp.eq.s32.totalorder %s24, 0
      %p198 = por %p196, %p197
      %s200 = sadd.s32 %s199, 1
      %p203 = scmp.eq.s32.totalorder %s18, 7
      %p204 = scmp.ne.s32.totalorder %s199, %s201
      %p205 = scmp.eq.s32.totalorder %s18, 0
      %p206 = por %p204, %p205
      %p207 = scmp.ne.s32.totalorder %s199, %s201
      %p208 = scmp.eq.s32.totalorder %s23, 7
      %p209 = por %p207, %p208
      %p210 = scmp.ne.s32.totalorder %s201, %s202
      %p211 = scmp.eq.s32.totalorder %s23, 0
      %p212 = por %p210, %p211
      %p213 = scmp.ne.s32.totalorder %s201, %s202
      %p214 = scmp.eq.s32.totalorder %s24, 7
      %p215 = por %p213, %p214
      %p217 = scmp.ne.s32.totalorder %s202, %s216
      %p218 = scmp.eq.s32.totalorder %s24, 0
      %p219 = por %p217, %p218
      %s220 = ssub.s32 %s18, %s25
      %p221 = scmp.eq.s32.totalorder %s220, 0
      %s223 = sadd.s32 %s222, 1
      %s224 = scalar_select %p221, %s222, %s223
      %p227 = pneg %p221
      %p228 = scmp.eq.s32.totalorder %s18, 7
      %p229 = por %p227, %p228
      %p230 = scmp.ne.s32.totalorder %s222, %s225
      %p231 = scmp.eq.s32.totalorder %s18, 0
      %p232 = por %p230, %p231
      %p233 = scmp.ne.s32.totalorder %s222, %s225
      %p234 = scmp.eq.s32.totalorder %s23, 7
      %p235 = por %p233, %p234
      %p236 = scmp.ne.s32.totalorder %s225, %s226
      %p237 = scmp.eq.s32.totalorder %s23, 0
      %p238 = por %p236, %p237
      %p239 = scmp.ne.s32.totalorder %s225, %s226
      %p240 = scmp.eq.s32.totalorder %s24, 7
      %p241 = por %p239, %p240
      %p243 = scmp.ne.s32.totalorder %s226, %s242
      %p244 = scmp.eq.s32.totalorder %s24, 0
      %p245 = por %p243, %p244
      %p246 = scmp.le.s32.totalorder 1, %s18
      %p247 = scmp.lt.s32.totalorder %s18, 9
      %p248 = pnand %p246, %p247
      %p249 = pneg %p248
      // Predicated region
      $region9: #{mlp_forward.1} parent=5 // pred_check
        _
      $region10: #{mlp_forward.1} parent=5 // pred_check_branch
        %251 = sbr.rel (%p248) target = $region12
      $region11: #{mlp_forward.1} parent=5 // pred_region
        %s252 = ssub.s32 %s18, 1
        // Predicated region
        $region13: #{mlp_forward.1} parent=11 // pred_check
          %p253 = pneg %p65
        $region14: #{mlp_forward.1} parent=11 // pred_check_branch
          %255 = sbr.rel (%p253) target = $region16
        $region15: #{mlp_forward.1} parent=11 // pred_region
          _
        $region16: #{mlp_forward.1} parent=11 // pred_fallthru
          _
        // Predicated region
        $region17: #{mlp_forward.1} parent=11 // pred_check
          %p256 = pneg %p86
        $region18: #{mlp_forward.1} parent=11 // pred_check_branch
          %258 = sbr.rel (%p256) target = $region20
        $region19: #{mlp_forward.1} parent=11 // pred_region
          _
        $region20: #{mlp_forward.1} parent=11 // pred_fallthru
          _
        // Predicated region
        $region21: #{mlp_forward.1} parent=11 // pred_check
          %p259 = pneg %p107
        $region22: #{mlp_forward.1} parent=11 // pred_check_branch
          %261 = sbr.rel (%p259) target = $region24
        $region23: #{mlp_forward.1} parent=11 // pred_region
          _
        $region24: #{mlp_forward.1} parent=11 // pred_fallthru
          _
        // Predicated region
        $region25: #{mlp_forward.1} parent=11 // pred_check
          %p262 = pneg %p128
        $region26: #{mlp_forward.1} parent=11 // pred_check_branch
          %264 = sbr.rel (%p262) target = $region28
        $region27: #{mlp_forward.1} parent=11 // pred_region
          _
        $region28: #{mlp_forward.1} parent=11 // pred_fallthru
          _
        // Predicated region
        $region29: #{mlp_forward.1} parent=11 // pred_check
          %p265 = pneg %p149
        $region30: #{mlp_forward.1} parent=11 // pred_check_branch
          %267 = sbr.rel (%p265) target = $region32
        $region31: #{mlp_forward.1} parent=11 // pred_region
          _
        $region32: #{mlp_forward.1} parent=11 // pred_fallthru
          _
        // Predicated region
        $region33: #{mlp_forward.1} parent=11 // pred_check
          %p268 = pneg %p170
        $region34: #{mlp_forward.1} parent=11 // pred_check_branch
          %270 = sbr.rel (%p268) target = $region36
        $region35: #{mlp_forward.1} parent=11 // pred_region
          _
        $region36: #{mlp_forward.1} parent=11 // pred_fallthru
          _
        // Predicated region
        $region37: #{mlp_forward.1} parent=11 // pred_check
          %p271 = pneg %p191
        $region38: #{mlp_forward.1} parent=11 // pred_check_branch
          %273 = sbr.rel (%p271) target = $region40
        $region39: #{mlp_forward.1} parent=11 // pred_region
          _
        $region40: #{mlp_forward.1} parent=11 // pred_fallthru
          _
        // Predicated region
        $region41: #{mlp_forward.1} parent=11 // pred_check
          %p274 = pneg %p212
        $region42: #{mlp_forward.1} parent=11 // pred_check_branch
          %276 = sbr.rel (%p274) target = $region44
        $region43: #{mlp_forward.1} parent=11 // pred_region
          _
        $region44: #{mlp_forward.1} parent=11 // pred_fallthru
          _
      $region12: #{mlp_forward.1} parent=5 // pred_fallthru
        _
      %p277 = scmp.lt.s32.totalorder %s18, 8
      // Predicated region
      $region45: #{mlp_forward.1} parent=5 // pred_check
        %p278 = pneg %p277
      $region46: #{mlp_forward.1} parent=5 // pred_check_branch
        %280 = sbr.rel (%p278) target = $region48
      $region47: #{mlp_forward.1} parent=5 // pred_region
        // Predicated region
        $region49: #{mlp_forward.1} parent=47 // pred_check
          %p281 = pneg %p38
        $region50: #{mlp_forward.1} parent=47 // pred_check_branch
          %283 = sbr.rel (%p281) target = $region52
        $region51: #{mlp_forward.1} parent=47 // pred_region
          %s284 = smul.u32 16, %s18
          %s285 = ssub.s32 125, %s284
          %p286 = scmp.lt.s32.totalorder %s285, 16
          %s287 = scalar_select %p286, %s285, 16
          %s288 = smul.u32 128, %s287
          %p289 = scmp.lt.s32.totalorder %s284, 124
          %s290 = scalar_select %p289, %s284, 124
          %s291 = smul.addr %s290, 8
          %s292 = scalar_lea.vmem %s0, %s291
          %s293 = smul.u32 16, %s18
          %s294 = ssub.s32 125, %s293
          %p295 = scmp.lt.s32.totalorder %s294, 16
          %s296 = scalar_select %p295, %s294, 16
          %s297 = smul.u32 128, %s296
        $region52: #{mlp_forward.1} parent=47 // pred_fallthru
          _
      $region48: #{mlp_forward.1} parent=5 // pred_fallthru
        _
      %p298 = scmp.le.s32.totalorder 1, %s18
      %p299 = scmp.lt.s32.totalorder %s18, 9
      %p300 = pnand %p298, %p299
      %p301 = pneg %p300
      // Predicated region
      $region53: #{mlp_forward.1} parent=5 // pred_check
        _
      $region54: #{mlp_forward.1} parent=5 // pred_check_branch
        %303 = sbr.rel (%p300) target = $region56
      $region55: #{mlp_forward.1} parent=5 // pred_region
        %s304 = ssub.s32 %s18, 1
        %s305 = smul.u32 16, %s23
        %s306 = ssub.s32 125, %s305
        %p307 = scmp.lt.s32.totalorder %s306, 16
        %s308 = scalar_select %p307, %s306, 16
        %s309 = smul.u32 128, %s308
        %p310 = scmp.lt.s32.totalorder %s305, 124
        %s311 = scalar_select %p310, %s305, 124
        %s312 = smul.addr %s311, 8
        %s313 = scalar_lea.vmem %s0, %s312
        %p314 = pneg %p44
        %p315 = pneg %p41
        %p316 = pneg %p65
        %p317 = pneg %p62
        %p318 = pneg %p86
        %p319 = pneg %p83
        %p320 = pneg %p107
        %p321 = pneg %p104
        %p322 = pneg %p128
        %p323 = pneg %p125
        %p324 = pneg %p149
        %p325 = pneg %p146
        %p326 = pneg %p170
        %p327 = pneg %p167
        %p328 = pneg %p191
        %p329 = pneg %p188
        %p330 = pneg %p212
        %p331 = pneg %p209
        %p332 = pneg %p238
        %p333 = pneg %p235
        %s334 = sand.u32 %s225, 1
        %s335 = scalar_lea.sflag [#allocation3], %s334
        %s336 = sand.u32 %s225, 1
        %s337 = smul.addr %s336, 4
        %s338 = scalar_lea.vmem [#allocation2], %s337
        %s339 = smul.u32 16, %s23
        %s340 = ssub.s32 125, %s339
        %p341 = scmp.lt.s32.totalorder %s340, 16
        %s342 = scalar_select %p341, %s340, 16
        %s343 = smul.u32 128, %s342
        %p344 = scmp.lt.s32.totalorder %s339, 124
        %s345 = scalar_select %p344, %s339, 124
        %s346 = smul.addr %s345, 8
        %s347 = scalar_lea.vmem %s0, %s346
        %s348 = smul.u32 16, %s23
        %s349 = ssub.s32 125, %s348
        %p350 = scmp.lt.s32.totalorder %s349, 16
        %s351 = scalar_select %p350, %s349, 16
        %s352 = smul.u32 128, %s351
        %v353 = vld [vmem:[%s1] sm:$0xff]
        %v354 = vld [vmem:[%s1 + $0x8] sm:$0xff]
        %v355 = vld [vmem:[%s1 + $0x10] sm:$0xff]
        %v356 = vld [vmem:[%s1 + $0x18] sm:$0xff]
        %v357 = vld [vmem:[%s347] sm:$0xff]
        %v358 = vld [vmem:[%s347 + $0x8] sm:$0xff]
        %v359 = vld [vmem:[%s347 + $0x10] sm:$0xff]
        %v360 = vld [vmem:[%s347 + $0x18] sm:$0xff]
        %v361 = vld [vmem:[%s347 + $0x20] sm:$0xff]
        %v362 = vld [vmem:[%s347 + $0x28] sm:$0xff]
        %v363 = vld [vmem:[%s347 + $0x30] sm:$0xff]
        %v364 = vld [vmem:[%s347 + $0x38] sm:$0xff]
        %v365 = vld [vmem:[%s347 + $0x40] sm:$0xff]
        %v366 = vld [vmem:[%s347 + $0x48] sm:$0xff]
        %v367 = vld [vmem:[%s347 + $0x50] sm:$0xff]
        %v368 = vld [vmem:[%s347 + $0x58] sm:$0xff]
        %v369 = vld [vmem:[%s347 + $0x60] sm:$0xff]
        %v370 = vld [vmem:[%s347 + $0x68] sm:$0xff]
        %v371 = vld [vmem:[%s347 + $0x70] sm:$0xff]
        %v372 = vld [vmem:[%s347 + $0x78] sm:$0xff]
        %v373 = vld [vmem:[%s2] sm:$0xff]
        %v374 = vld [vmem:[%s2 + $0x8] sm:$0xff]
        %v375 = vld [vmem:[%s2 + $0x10] sm:$0xff]
        %v376 = vld [vmem:[%s2 + $0x18] sm:$0xff]
        %378 = vset.pattern.permute.xlu0 0
        %379 = vperm.xlu0 %378, %v373
        %v380 = vpop.permute.xlu0 %379
        %383 = vset.pattern.permute.xlu0 0
        %384 = vperm.xlu0 %383, %v374
        %v385 = vpop.permute.xlu0 %384
        %388 = vset.pattern.permute.xlu0 0
        %389 = vperm.xlu0 %388, %v375
        %v390 = vpop.permute.xlu0 %389
        %393 = vset.pattern.permute.xlu0 0
        %394 = vperm.xlu0 %393, %v376
        %v395 = vpop.permute.xlu0 %394
        %vm397 = vcmask 130048
        %v399 = vsel %vm397, %v353, 0
        %v402 = vsel %vm397, %v354, 0
        %v405 = vsel %vm397, %v355, 0
        %v408 = vsel %vm397, %v356, 0
        %v411 = vsel %vm397, %v357, 0
        %v414 = vsel %vm397, %v358, 0
        %v417 = vsel %vm397, %v359, 0
        %v420 = vsel %vm397, %v360, 0
        %v423 = vsel %vm397, %v361, 0
        %v426 = vsel %vm397, %v362, 0
        %v429 = vsel %vm397, %v363, 0
        %v432 = vsel %vm397, %v364, 0
        %v435 = vsel %vm397, %v365, 0
        %v438 = vsel %vm397, %v366, 0
        %v441 = vsel %vm397, %v367, 0
        %v444 = vsel %vm397, %v368, 0
        %v447 = vsel %vm397, %v369, 0
        %v450 = vsel %vm397, %v370, 0
        %v453 = vsel %vm397, %v371, 0
        %v456 = vsel %vm397, %v372, 0
        %458 = vmatprep.subr.mxu0 0.0
        %459 = vmatpush1.xpose.msra.mxu0 %v411
        %460 = vmatprep.subr.mxu0 0.0
        %461 = vmatpush1.xpose.msra.mxu0 %v414
        %462 = vmatprep.subr.mxu0 0.0
        %463 = vmatpush1.xpose.msra.mxu0 %v417
        %464 = vmatprep.subr.mxu0 0.0
        %465 = vmatpush1.xpose.msra.mxu0 %v420
        %466 = vmatprep.subr.mxu0 0.0
        %467 = vmatpush1.xpose.msra.mxu0 %v423
        %468 = vmatprep.subr.mxu0 0.0
        %469 = vmatpush1.xpose.msra.mxu0 %v426
        %470 = vmatprep.subr.mxu0 0.0
        %471 = vmatpush1.xpose.msra.mxu0 %v429
        %472 = vmatprep.subr.mxu0 0.0
        %473 = vmatpush1.xpose.msra.mxu0 %v432
        %474 = vmatprep.subr.mxu0 0.0
        %475 = vmatpush1.xpose.msra.mxu0 %v435
        %476 = vmatprep.subr.mxu0 0.0
        %477 = vmatpush1.xpose.msra.mxu0 %v438
        %478 = vmatprep.subr.mxu0 0.0
        %479 = vmatpush1.xpose.msra.mxu0 %v441
        %480 = vmatprep.subr.mxu0 0.0
        %481 = vmatpush1.xpose.msra.mxu0 %v444
        %482 = vmatprep.subr.mxu0 0.0
        %483 = vmatpush1.xpose.msra.mxu0 %v447
        %484 = vmatprep.subr.mxu0 0.0
        %485 = vmatpush1.xpose.msra.mxu0 %v450
        %486 = vmatprep.subr.mxu0 0.0
        %487 = vmatpush1.xpose.msra.mxu0 %v453
        %488 = vmatprep.subr.mxu0 0.0
        %489 = vmatpush1.xpose.msra.mxu0 %v456
        %490 = vmatprep.subr.mxu0 0.0
        %491 = vmatpush1.xpose.msra.mxu0 0.0
        %492 = vmatprep.subr.mxu0 0.0
        %493 = vmatpush1.xpose.msra.mxu0 0.0
        %494 = vmatprep.subr.mxu0 0.0
        %495 = vmatpush1.xpose.msra.mxu0 0.0
        %496 = vmatprep.subr.mxu0 0.0
        %497 = vmatpush1.xpose.msra.mxu0 0.0
        %498 = vmatprep.subr.mxu0 0.0
        %499 = vmatpush1.xpose.msra.mxu0 0.0
        %500 = vmatprep.subr.mxu0 0.0
        %501 = vmatpush1.xpose.msra.mxu0 0.0
        %502 = vmatprep.subr.mxu0 0.0
        %503 = vmatpush1.xpose.msra.mxu0 0.0
        %504 = vmatprep.subr.mxu0 0.0
        %505 = vmatpush1.xpose.msra.mxu0 0.0
        %506 = vmatprep.subr.mxu0 0.0
        %507 = vmatpush1.xpose.msra.mxu0 0.0
        %508 = vmatprep.subr.mxu0 0.0
        %509 = vmatpush1.xpose.msra.mxu0 0.0
        %510 = vmatprep.subr.mxu0 0.0
        %511 = vmatpush1.xpose.msra.mxu0 0.0
        %512 = vmatprep.subr.mxu0 0.0
        %513 = vmatpush1.xpose.msra.mxu0 0.0
        %514 = vmatprep.subr.mxu0 0.0
        %515 = vmatpush1.xpose.msra.mxu0 0.0
        %516 = vmatprep.subr.mxu0 0.0
        %517 = vmatpush1.xpose.msra.mxu0 0.0
        %518 = vmatprep.subr.mxu0 0.0
        %519 = vmatpush1.xpose.msra.mxu0 0.0
        %520 = vmatprep.subr.mxu0 0.0
        %521 = vmatpush1.xpose.msra.mxu0 0.0
        %522 = vmatprep.mubr.f32.mxu0 0.0
        %523 = vmatmul.mubr.f32.gmra.mrb[0].mxu0 %v399
        %v524 = vpop.f32.mrb[0].mxu0
        %v525 = vadd.f32 %v380, %v524
        %v526 = vpop.f32.mrb[0].mxu0
        %527 = vmatprep.mubr.f32.mxu0 0.0
        %528 = vmatmul.mubr.f32.gmra.mrb[0].mxu0 %v402
        %v529 = vpop.f32.mrb[0].mxu0
        %v530 = vadd.f32 %v385, %v529
        %v531 = vpop.f32.mrb[0].mxu0
        %532 = vmatprep.mubr.f32.mxu0 0.0
        %533 = vmatmul.mubr.f32.gmra.mrb[0].mxu0 %v405
        %v534 = vpop.f32.mrb[0].mxu0
        %v535 = vadd.f32 %v390, %v534
        %v536 = vpop.f32.mrb[0].mxu0
        %537 = vmatprep.mubr.f32.mxu0 0.0
        %538 = vmatmul.mubr.f32.gmra.mrb[0].mxu0 %v408
        %v539 = vpop.f32.mrb[0].mxu0
        %v540 = vadd.f32 %v395, %v539
        %v541 = vpop.f32.mrb[0].mxu0
        %542 = vdwg.mxu0
        %v543 = vmax.f32 %v525, 0.0
        %v544 = vmax.f32 %v530, 0.0
        %v545 = vmax.f32 %v535, 0.0
        %v546 = vmax.f32 %v540, 0.0
        %v547 = vld [vmem:[%s3] sm:$0xff]
        %v548 = vld [vmem:[%s3 + $0x8] sm:$0xff]
        %v549 = vld [vmem:[%s3 + $0x10] sm:$0xff]
        %v550 = vld [vmem:[%s3 + $0x18] sm:$0xff]
        %v551 = vld [vmem:[%s4] sm:$0xff]
        %v552 = vld [vmem:[%s4 + $0x8] sm:$0xff]
        %v553 = vld [vmem:[%s4 + $0x10] sm:$0xff]
        %v554 = vld [vmem:[%s4 + $0x18] sm:$0xff]
        %556 = vset.pattern.permute.xlu0 0
        %557 = vperm.xlu0 %556, %v551
        %v558 = vpop.permute.xlu0 %557
        %561 = vset.pattern.permute.xlu0 0
        %562 = vperm.xlu0 %561, %v552
        %v563 = vpop.permute.xlu0 %562
        %566 = vset.pattern.permute.xlu0 0
        %567 = vperm.xlu0 %566, %v553
        %v568 = vpop.permute.xlu0 %567
        %571 = vset.pattern.permute.xlu0 0
        %572 = vperm.xlu0 %571, %v554
        %v573 = vpop.permute.xlu0 %572
        %vm575 = vcmask 261120
        %v577 = vsel %vm575, %v547, 0
        %v580 = vsel %vm575, %v548, 0
        %v583 = vsel %vm575, %v549, 0
        %v586 = vsel %vm575, %v550, 0
        %588 = vmatprep.subr.mxu0 0.0
        %589 = vmatpush1.msra.mxu0 %v543
        %590 = vmatprep.subr.mxu0 0.0
        %591 = vmatpush1.msra.mxu0 %v544
        %592 = vmatprep.subr.mxu0 0.0
        %593 = vmatpush1.msra.mxu0 %v545
        %594 = vmatprep.subr.mxu0 0.0
        %595 = vmatpush1.msra.mxu0 %v546
        %596 = vmatprep.subr.mxu0 0.0
        %597 = vmatpush1.msra.mxu0 0.0
        %598 = vmatprep.subr.mxu0 0.0
        %599 = vmatpush1.msra.mxu0 0.0
        %600 = vmatprep.subr.mxu0 0.0
        %601 = vmatpush1.msra.mxu0 0.0
        %602 = vmatprep.subr.mxu0 0.0
        %603 = vmatpush1.msra.mxu0 0.0
        %604 = vmatprep.subr.mxu0 0.0
        %605 = vmatpush1.msra.mxu0 0.0
        %606 = vmatprep.subr.mxu0 0.0
        %607 = vmatpush1.msra.mxu0 0.0
        %608 = vmatprep.subr.mxu0 0.0
        %609 = vmatpush1.msra.mxu0 0.0
        %610 = vmatprep.subr.mxu0 0.0
        %611 = vmatpush1.msra.mxu0 0.0
        %612 = vmatprep.subr.mxu0 0.0
        %613 = vmatpush1.msra.mxu0 0.0
        %614 = vmatprep.subr.mxu0 0.0
        %615 = vmatpush1.msra.mxu0 0.0
        %616 = vmatprep.subr.mxu0 0.0
        %617 = vmatpush1.msra.mxu0 0.0
        %618 = vmatprep.subr.mxu0 0.0
        %619 = vmatpush1.msra.mxu0 0.0
        %620 = vmatprep.subr.mxu0 0.0
        %621 = vmatpush1.msra.mxu0 0.0
        %622 = vmatprep.subr.mxu0 0.0
        %623 = vmatpush1.msra.mxu0 0.0
        %624 = vmatprep.subr.mxu0 0.0
        %625 = vmatpush1.msra.mxu0 0.0
        %626 = vmatprep.subr.mxu0 0.0
        %627 = vmatpush1.msra.mxu0 0.0
        %628 = vmatprep.subr.mxu0 0.0
        %629 = vmatpush1.msra.mxu0 0.0
        %630 = vmatprep.subr.mxu0 0.0
        %631 = vmatpush1.msra.mxu0 0.0
        %632 = vmatprep.subr.mxu0 0.0
        %633 = vmatpush1.msra.mxu0 0.0
        %634 = vmatprep.subr.mxu0 0.0
        %635 = vmatpush1.msra.mxu0 0.0
        %636 = vmatprep.subr.mxu0 0.0
        %637 = vmatpush1.msra.mxu0 0.0
        %638 = vmatprep.subr.mxu0 0.0
        %639 = vmatpush1.msra.mxu0 0.0
        %640 = vmatprep.subr.mxu0 0.0
        %641 = vmatpush1.msra.mxu0 0.0
        %642 = vmatprep.subr.mxu0 0.0
        %643 = vmatpush1.msra.mxu0 0.0
        %644 = vmatprep.subr.mxu0 0.0
        %645 = vmatpush1.msra.mxu0 0.0
        %646 = vmatprep.subr.mxu0 0.0
        %647 = vmatpush1.msra.mxu0 0.0
        %648 = vmatprep.subr.mxu0 0.0
        %649 = vmatpush1.msra.mxu0 0.0
        %650 = vmatprep.subr.mxu0 0.0
        %651 = vmatpush1.msra.mxu0 0.0
        %652 = vmatprep.mubr.f32.mxu0 0.0
        %653 = vmatmul.mubr.f32.gmra.mrb[0].mxu0 %v577
        %v654 = vpop.f32.mrb[0].mxu0
        %v655 = vadd.f32 %v558, %v654
        %v656 = vpop.f32.mrb[0].mxu0
        %657 = vmatprep.mubr.f32.mxu0 0.0
        %658 = vmatmul.mubr.f32.gmra.mrb[0].mxu0 %v580
        %v659 = vpop.f32.mrb[0].mxu0
        %v660 = vadd.f32 %v563, %v659
        %v661 = vpop.f32.mrb[0].mxu0
        %662 = vmatprep.mubr.f32.mxu0 0.0
        %663 = vmatmul.mubr.f32.gmra.mrb[0].mxu0 %v583
        %v664 = vpop.f32.mrb[0].mxu0
        %v665 = vadd.f32 %v568, %v664
        %v666 = vpop.f32.mrb[0].mxu0
        %667 = vmatprep.mubr.f32.mxu0 0.0
        %668 = vmatmul.mubr.f32.gmra.mrb[0].mxu0 %v586
        %v669 = vpop.f32.mrb[0].mxu0
        %v670 = vadd.f32 %v573, %v669
        %v671 = vpop.f32.mrb[0].mxu0
        %672 = vdwg.mxu0
        %v673 = vld [vmem:[%s5] sm:$0xff]
        %v674 = vld [vmem:[%s5 + $0x8] sm:$0xff]
        %v675 = vld [vmem:[%s5 + $0x10] sm:$0xff]
        %v676 = vld [vmem:[%s5 + $0x18] sm:$0xff]
        %v677 = vld [vmem:[%s6] sm:$0xff]
        %v678 = vld [vmem:[%s6 + $0x8] sm:$0xff]
        %v679 = vld [vmem:[%s6 + $0x10] sm:$0xff]
        %v680 = vld [vmem:[%s6 + $0x18] sm:$0xff]
        %v681 = vadd.f32 %v655, %v660
        %v682 = vadd.f32 %v681, %v665
        %v683 = vadd.f32 %v682, %v670
        %v684 = vrot.slane %v683, 4
        %v685 = vadd.f32 %v683, %v684
        %v686 = vrot.slane %v685, 2
        %v687 = vadd.f32 %v685, %v686
        %v688 = vrot.slane %v687, 1
        %v689 = vadd.f32 %v687, %v688
        %v690 = vrcp.pop 32.0
        %v691 = vmul.f32 %v689, %v690
        %v692 = vmul.f32 %v655, %v655
        %v693 = vmul.f32 %v660, %v660
        %v694 = vmul.f32 %v665, %v665
        %v695 = vmul.f32 %v670, %v670
        %v696 = vadd.f32 %v692, %v693
        %v697 = vadd.f32 %v696, %v694
        %v698 = vadd.f32 %v697, %v695
        %v699 = vrot.slane %v698, 4
        %v700 = vadd.f32 %v698, %v699
        %v701 = vrot.slane %v700, 2
        %v702 = vadd.f32 %v700, %v701
        %v703 = vrot.slane %v702, 1
        %v704 = vadd.f32 %v702, %v703
        %v705 = vmul.f32 %v704, %v690
        %v706 = vmul.f32 %v691, %v691
        %v707 = vsub.f32 %v705, %v706
        %v708 = vadd.f32 %v707, 1e-05
        %v709 = vrsqrt.pop %v708
        %v710 = vsub.f32 %v655, %v691
        %v711 = vsub.f32 %v660, %v691
        %v712 = vsub.f32 %v665, %v691
        %v713 = vsub.f32 %v670, %v691
        %v714 = vmul.f32 %v710, %v709
        %v715 = vmul.f32 %v711, %v709
        %v716 = vmul.f32 %v712, %v709
        %v717 = vmul.f32 %v713, %v709
        %719 = vset.pattern.permute.xlu0 0
        %720 = vperm.xlu0 %719, %v673
        %v721 = vpop.permute.xlu0 %720
        %724 = vset.pattern.permute.xlu0 0
        %725 = vperm.xlu0 %724, %v674
        %v726 = vpop.permute.xlu0 %725
        %729 = vset.pattern.permute.xlu0 0
        %730 = vperm.xlu0 %729, %v675
        %v731 = vpop.permute.xlu0 %730
        %734 = vset.pattern.permute.xlu0 0
        %735 = vperm.xlu0 %734, %v676
        %v736 = vpop.permute.xlu0 %735
        %v738 = vmul.f32 %v714, %v721
        %v739 = vmul.f32 %v715, %v726
        %v740 = vmul.f32 %v716, %v731
        %v741 = vmul.f32 %v717, %v736
        %743 = vset.pattern.permute.xlu0 0
        %744 = vperm.xlu0 %743, %v677
        %v745 = vpop.permute.xlu0 %744
        %748 = vset.pattern.permute.xlu0 0
        %749 = vperm.xlu0 %748, %v678
        %v750 = vpop.permute.xlu0 %749
        %753 = vset.pattern.permute.xlu0 0
        %754 = vperm.xlu0 %753, %v679
        %v755 = vpop.permute.xlu0 %754
        %758 = vset.pattern.permute.xlu0 0
        %759 = vperm.xlu0 %758, %v680
        %v760 = vpop.permute.xlu0 %759
        %v762 = vadd.f32 %v738, %v745
        %v763 = vadd.f32 %v739, %v750
        %v764 = vadd.f32 %v740, %v755
        %v765 = vadd.f32 %v741, %v760
        %v766 = vmax.f32 %v762, 0.0
        %v767 = vmax.f32 %v763, 0.0
        %v768 = vmax.f32 %v764, 0.0
        %v769 = vmax.f32 %v765, 0.0
        %s770 = scalar_lea.vmem %s3, 32
        %v771 = vld [vmem:[%s770] sm:$0xff]
        %v772 = vld [vmem:[%s770 + $0x8] sm:$0xff]
        %v773 = vld [vmem:[%s770 + $0x10] sm:$0xff]
        %v774 = vld [vmem:[%s770 + $0x18] sm:$0xff]
        %s775 = scalar_lea.vmem %s4, 32
        %v776 = vld [vmem:[%s775] sm:$0xff]
        %v777 = vld [vmem:[%s775 + $0x8] sm:$0xff]
        %v778 = vld [vmem:[%s775 + $0x10] sm:$0xff]
        %v779 = vld [vmem:[%s775 + $0x18] sm:$0xff]
        %781 = vset.pattern.permute.xlu0 0
        %782 = vperm.xlu0 %781, %v776
        %v783 = vpop.permute.xlu0 %782
        %786 = vset.pattern.permute.xlu0 0
        %787 = vperm.xlu0 %786, %v777
        %v788 = vpop.permute.xlu0 %787
        %791 = vset.pattern.permute.xlu0 0
        %792 = vperm.xlu0 %791, %v778
        %v793 = vpop.permute.xlu0 %792
        %796 = vset.pattern.permute.xlu0 0
        %797 = vperm.xlu0 %796, %v779
        %v798 = vpop.permute.xlu0 %797
        %v801 = vsel %vm575, %v771, 0
        %v804 = vsel %vm575, %v772, 0
        %v807 = vsel %vm575, %v773, 0
        %v810 = vsel %vm575, %v774, 0
        %812 = vmatprep.subr.mxu0 0.0
        %813 = vmatpush1.msra.mxu0 %v766
        %814 = vmatprep.subr.mxu0 0.0
        %815 = vmatpush1.msra.mxu0 %v767
        %816 = vmatprep.subr.mxu0 0.0
        %817 = vmatpush1.msra.mxu0 %v768
        %818 = vmatprep.subr.mxu0 0.0
        %819 = vmatpush1.msra.mxu0 %v769
        %820 = vmatprep.subr.mxu0 0.0
        %821 = vmatpush1.msra.mxu0 0.0
        %822 = vmatprep.subr.mxu0 0.0
        %823 = vmatpush1.msra.mxu0 0.0
        %824 = vmatprep.subr.mxu0 0.0
        %825 = vmatpush1.msra.mxu0 0.0
        %826 = vmatprep.subr.mxu0 0.0
        %827 = vmatpush1.msra.mxu0 0.0
        %828 = vmatprep.subr.mxu0 0.0
        %829 = vmatpush1.msra.mxu0 0.0
        %830 = vmatprep.subr.mxu0 0.0
        %831 = vmatpush1.msra.mxu0 0.0
        %832 = vmatprep.subr.mxu0 0.0
        %833 = vmatpush1.msra.mxu0 0.0
        %834 = vmatprep.subr.mxu0 0.0
        %835 = vmatpush1.msra.mxu0 0.0
        %836 = vmatprep.subr.mxu0 0.0
        %837 = vmatpush1.msra.mxu0 0.0
        %838 = vmatprep.subr.mxu0 0.0
        %839 = vmatpush1.msra.mxu0 0.0
        %840 = vmatprep.subr.mxu0 0.0
        %841 = vmatpush1.msra.mxu0 0.0
        %842 = vmatprep.subr.mxu0 0.0
        %843 = vmatpush1.msra.mxu0 0.0
        %844 = vmatprep.subr.mxu0 0.0
        %845 = vmatpush1.msra.mxu0 0.0
        %846 = vmatprep.subr.mxu0 0.0
        %847 = vmatpush1.msra.mxu0 0.0
        %848 = vmatprep.subr.mxu0 0.0
        %849 = vmatpush1.msra.mxu0 0.0
        %850 = vmatprep.subr.mxu0 0.0
        %851 = vmatpush1.msra.mxu0 0.0
        %852 = vmatprep.subr.mxu0 0.0
        %853 = vmatpush1.msra.mxu0 0.0
        %854 = vmatprep.subr.mxu0 0.0
        %855 = vmatpush1.msra.mxu0 0.0
        %856 = vmatprep.subr.mxu0 0.0
        %857 = vmatpush1.msra.mxu0 0.0
        %858 = vmatprep.subr.mxu0 0.0
        %859 = vmatpush1.msra.mxu0 0.0
        %860 = vmatprep.subr.mxu0 0.0
        %861 = vmatpush1.msra.mxu0 0.0
        %862 = vmatprep.subr.mxu0 0.0
        %863 = vmatpush1.msra.mxu0 0.0
        %864 = vmatprep.subr.mxu0 0.0
        %865 = vmatpush1.msra.mxu0 0.0
        %866 = vmatprep.subr.mxu0 0.0
        %867 = vmatpush1.msra.mxu0 0.0
        %868 = vmatprep.subr.mxu0 0.0
        %869 = vmatpush1.msra.mxu0 0.0
        %870 = vmatprep.subr.mxu0 0.0
        %871 = vmatpush1.msra.mxu0 0.0
        %872 = vmatprep.subr.mxu0 0.0
        %873 = vmatpush1.msra.mxu0 0.0
        %874 = vmatprep.subr.mxu0 0.0
        %875 = vmatpush1.msra.mxu0 0.0
        %876 = vmatprep.mubr.f32.mxu0 0.0
        %877 = vmatmul.mubr.f32.gmra.mrb[0].mxu0 %v801
        %v878 = vpop.f32.mrb[0].mxu0
        %v879 = vadd.f32 %v783, %v878
        %v880 = vpop.f32.mrb[0].mxu0
        %881 = vmatprep.mubr.f32.mxu0 0.0
        %882 = vmatmul.mubr.f32.gmra.mrb[0].mxu0 %v804
        %v883 = vpop.f32.mrb[0].mxu0
        %v884 = vadd.f32 %v788, %v883
        %v885 = vpop.f32.mrb[0].mxu0
        %886 = vmatprep.mubr.f32.mxu0 0.0
        %887 = vmatmul.mubr.f32.gmra.mrb[0].mxu0 %v807
        %v888 = vpop.f32.mrb[0].mxu0
        %v889 = vadd.f32 %v793, %v888
        %v890 = vpop.f32.mrb[0].mxu0
        %891 = vmatprep.mubr.f32.mxu0 0.0
        %892 = vmatmul.mubr.f32.gmra.mrb[0].mxu0 %v810
        %v893 = vpop.f32.mrb[0].mxu0
        %v894 = vadd.f32 %v798, %v893
        %v895 = vpop.f32.mrb[0].mxu0
        %896 = vdwg.mxu0
        %s897 = scalar_lea.vmem %s5, 32
        %v898 = vld [vmem:[%s897] sm:$0xff]
        %v899 = vld [vmem:[%s897 + $0x8] sm:$0xff]
        %v900 = vld [vmem:[%s897 + $0x10] sm:$0xff]
        %v901 = vld [vmem:[%s897 + $0x18] sm:$0xff]
        %s902 = scalar_lea.vmem %s6, 32
        %v903 = vld [vmem:[%s902] sm:$0xff]
        %v904 = vld [vmem:[%s902 + $0x8] sm:$0xff]
        %v905 = vld [vmem:[%s902 + $0x10] sm:$0xff]
        %v906 = vld [vmem:[%s902 + $0x18] sm:$0xff]
        %v907 = vadd.f32 %v879, %v884
        %v908 = vadd.f32 %v907, %v889
        %v909 = vadd.f32 %v908, %v894
        %v910 = vrot.slane %v909, 4
        %v911 = vadd.f32 %v909, %v910
        %v912 = vrot.slane %v911, 2
        %v913 = vadd.f32 %v911, %v912
        %v914 = vrot.slane %v913, 1
        %v915 = vadd.f32 %v913, %v914
        %v916 = vmul.f32 %v915, %v690
        %v917 = vmul.f32 %v879, %v879
        %v918 = vmul.f32 %v884, %v884
        %v919 = vmul.f32 %v889, %v889
        %v920 = vmul.f32 %v894, %v894
        %v921 = vadd.f32 %v917, %v918
        %v922 = vadd.f32 %v921, %v919
        %v923 = vadd.f32 %v922, %v920
        %v924 = vrot.slane %v923, 4
        %v925 = vadd.f32 %v923, %v924
        %v926 = vrot.slane %v925, 2
        %v927 = vadd.f32 %v925, %v926
        %v928 = vrot.slane %v927, 1
        %v929 = vadd.f32 %v927, %v928
        %v930 = vmul.f32 %v929, %v690
        %v931 = vmul.f32 %v916, %v916
        %v932 = vsub.f32 %v930, %v931
        %v933 = vadd.f32 %v932, 1e-05
        %v934 = vrsqrt.pop %v933
        %v935 = vsub.f32 %v879, %v916
        %v936 = vsub.f32 %v884, %v916
        %v937 = vsub.f32 %v889, %v916
        %v938 = vsub.f32 %v894, %v916
        %v939 = vmul.f32 %v935, %v934
        %v940 = vmul.f32 %v936, %v934
        %v941 = vmul.f32 %v937, %v934
        %v942 = vmul.f32 %v938, %v934
        %944 = vset.pattern.permute.xlu0 0
        %945 = vperm.xlu0 %944, %v898
        %v946 = vpop.permute.xlu0 %945
        %949 = vset.pattern.permute.xlu0 0
        %950 = vperm.xlu0 %949, %v899
        %v951 = vpop.permute.xlu0 %950
        %954 = vset.pattern.permute.xlu0 0
        %955 = vperm.xlu0 %954, %v900
        %v956 = vpop.permute.xlu0 %955
        %959 = vset.pattern.permute.xlu0 0
        %960 = vperm.xlu0 %959, %v901
        %v961 = vpop.permute.xlu0 %960
        %v963 = vmul.f32 %v939, %v946
        %v964 = vmul.f32 %v940, %v951
        %v965 = vmul.f32 %v941, %v956
        %v966 = vmul.f32 %v942, %v961
        %968 = vset.pattern.permute.xlu0 0
        %969 = vperm.xlu0 %968, %v903
        %v970 = vpop.permute.xlu0 %969
        %973 = vset.pattern.permute.xlu0 0
        %974 = vperm.xlu0 %973, %v904
        %v975 = vpop.permute.xlu0 %974
        %978 = vset.pattern.permute.xlu0 0
        %979 = vperm.xlu0 %978, %v905
        %v980 = vpop.permute.xlu0 %979
        %983 = vset.pattern.permute.xlu0 0
        %984 = vperm.xlu0 %983, %v906
        %v985 = vpop.permute.xlu0 %984
        %v987 = vadd.f32 %v963, %v970
        %v988 = vadd.f32 %v964, %v975
        %v989 = vadd.f32 %v965, %v980
        %v990 = vadd.f32 %v966, %v985
        %v991 = vmax.f32 %v987, 0.0
        %v992 = vmax.f32 %v988, 0.0
        %v993 = vmax.f32 %v989, 0.0
        %v994 = vmax.f32 %v990, 0.0
        %v995 = vld [vmem:[%s7] sm:$0xff]
        %v996 = vld [vmem:[%s8] sm:$0xff]
        %998 = vset.pattern.permute.xlu0 0
        %999 = vperm.xlu0 %998, %v996
        %v1000 = vpop.permute.xlu0 %999
        %v1003 = vsel %vm575, %v995, 0
        %1005 = vmatprep.subr.mxu0 0.0
        %1006 = vmatpush1.msra.mxu0 %v991
        %1007 = vmatprep.subr.mxu0 0.0
        %1008 = vmatpush1.msra.mxu0 %v992
        %1009 = vmatprep.subr.mxu0 0.0
        %1010 = vmatpush1.msra.mxu0 %v993
        %1011 = vmatprep.subr.mxu0 0.0
        %1012 = vmatpush1.msra.mxu0 %v994
        %1013 = vmatprep.subr.mxu0 0.0
        %1014 = vmatpush1.msra.mxu0 0.0
        %1015 = vmatprep.subr.mxu0 0.0
        %1016 = vmatpush1.msra.mxu0 0.0
        %1017 = vmatprep.subr.mxu0 0.0
        %1018 = vmatpush1.msra.mxu0 0.0
        %1019 = vmatprep.subr.mxu0 0.0
        %1020 = vmatpush1.msra.mxu0 0.0
        %1021 = vmatprep.subr.mxu0 0.0
        %1022 = vmatpush1.msra.mxu0 0.0
        %1023 = vmatprep.subr.mxu0 0.0
        %1024 = vmatpush1.msra.mxu0 0.0
        %1025 = vmatprep.subr.mxu0 0.0
        %1026 = vmatpush1.msra.mxu0 0.0
        %1027 = vmatprep.subr.mxu0 0.0
        %1028 = vmatpush1.msra.mxu0 0.0
        %1029 = vmatprep.subr.mxu0 0.0
        %1030 = vmatpush1.msra.mxu0 0.0
        %1031 = vmatprep.subr.mxu0 0.0
        %1032 = vmatpush1.msra.mxu0 0.0
        %1033 = vmatprep.subr.mxu0 0.0
        %1034 = vmatpush1.msra.mxu0 0.0
        %1035 = vmatprep.subr.mxu0 0.0
        %1036 = vmatpush1.msra.mxu0 0.0
        %1037 = vmatprep.subr.mxu0 0.0
        %1038 = vmatpush1.msra.mxu0 0.0
        %1039 = vmatprep.subr.mxu0 0.0
        %1040 = vmatpush1.msra.mxu0 0.0
        %1041 = vmatprep.subr.mxu0 0.0
        %1042 = vmatpush1.msra.mxu0 0.0
        %1043 = vmatprep.subr.mxu0 0.0
        %1044 = vmatpush1.msra.mxu0 0.0
        %1045 = vmatprep.subr.mxu0 0.0
        %1046 = vmatpush1.msra.mxu0 0.0
        %1047 = vmatprep.subr.mxu0 0.0
        %1048 = vmatpush1.msra.mxu0 0.0
        %1049 = vmatprep.subr.mxu0 0.0
        %1050 = vmatpush1.msra.mxu0 0.0
        %1051 = vmatprep.subr.mxu0 0.0
        %1052 = vmatpush1.msra.mxu0 0.0
        %1053 = vmatprep.subr.mxu0 0.0
        %1054 = vmatpush1.msra.mxu0 0.0
        %1055 = vmatprep.subr.mxu0 0.0
        %1056 = vmatpush1.msra.mxu0 0.0
        %1057 = vmatprep.subr.mxu0 0.0
        %1058 = vmatpush1.msra.mxu0 0.0
        %1059 = vmatprep.subr.mxu0 0.0
        %1060 = vmatpush1.msra.mxu0 0.0
        %1061 = vmatprep.subr.mxu0 0.0
        %1062 = vmatpush1.msra.mxu0 0.0
        %1063 = vmatprep.subr.mxu0 0.0
        %1064 = vmatpush1.msra.mxu0 0.0
        %1065 = vmatprep.subr.mxu0 0.0
        %1066 = vmatpush1.msra.mxu0 0.0
        %1067 = vmatprep.subr.mxu0 0.0
        %1068 = vmatpush1.msra.mxu0 0.0
        %1069 = vmatprep.mubr.f32.mxu0 0.0
        %1070 = vmatmul.mubr.f32.gmra.mrb[0].mxu0 %v1003
        %v1071 = vpop.f32.mrb[0].mxu0
        %v1072 = vadd.f32 %v1000, %v1071
        %v1073 = vpop.f32.mrb[0].mxu0
        %1074 = vdwg.mxu0
        %1075 = vst [vmem:[%s338] sm:$0xf] %v1072
        %s1076 = sand.u32 %s225, 1
        %s1077 = scalar_lea.sflag [#allocation3], %s1076
        %s1078 = sand.u32 %s225, 1
        %s1079 = smul.addr %s1078, 4
        %s1080 = scalar_lea.vmem [#allocation2], %s1079
        // Predicated region
        $region57: #{mlp_forward.1} parent=55 // pred_check
          %p1081 = pneg %p235
        $region58: #{mlp_forward.1} parent=55 // pred_check_branch
          %1083 = sbr.rel (%p1081) target = $region60
        $region59: #{mlp_forward.1} parent=55 // pred_region
          %s1085 = ssub.s32 64, 64
          %1086 = vsyncadd %s1077, %s1085
          %s1087 = smul.addr %s23, 64
          %s1088 = scalar_lea.hbm %s9, %s1087
          %s1090 = sshll.u32 %s1080, 4
          %s1091 = int_to_ptr.vmem [resolvable:$true] %s1090
          %1093 = dma.vmem_to_hbm [thread:$0]  %s1091, 64, %s1088, %s1077
        $region60: #{mlp_forward.1} parent=55 // pred_fallthru
          _
      $region56: #{mlp_forward.1} parent=5 // pred_fallthru
        _
      %p1094 = scmp.le.s32.totalorder 2, %s18
      // Predicated region
      $region61: #{mlp_forward.1} parent=5 // pred_check
        %p1095 = pneg %p1094
      $region62: #{mlp_forward.1} parent=5 // pred_check_branch
        %1097 = sbr.rel (%p1095) target = $region64
      $region63: #{mlp_forward.1} parent=5 // pred_region
        %s1098 = ssub.s32 %s18, 2
        // Predicated region
        $region65: #{mlp_forward.1} parent=63 // pred_check
          %p1099 = pneg %p241
        $region66: #{mlp_forward.1} parent=63 // pred_check_branch
          %1101 = sbr.rel (%p1099) target = $region68
        $region67: #{mlp_forward.1} parent=63 // pred_region
          %s1102 = sand.u32 %s226, 1
          %s1103 = scalar_lea.sflag [#allocation3], %s1102
          %s1104 = sand.u32 %s226, 1
          %s1105 = smul.addr %s1104, 4
          %s1106 = scalar_lea.vmem [#allocation2], %s1105
          %1107 = dma.done %s1103, 64
        $region68: #{mlp_forward.1} parent=63 // pred_fallthru
          _
      $region64: #{mlp_forward.1} parent=5 // pred_fallthru
        _
    $region6: #{mlp_forward.1} parent=1 // loop_footer
      %s22 = sadd.s32 1, %s18
    $region7: #{mlp_forward.1} parent=1 // loop_footer_branch
      %17 = sbr.rel target = $region3
    $region8: #{mlp_forward.1} parent=1 // loop_exit
      _
    %1108 = vsyncpa [#allocation3], 1
    %s1109 = scalar_lea.sflag [#allocation3], 1
    %1110 = vsyncpa %s1109, 1

</llo_original>
